<compile_context>
chip_gen: v5e
topology: v5e:2x2
jax: 0.10.0
libtpu: 0.0.40
codegen_flags: <defaults>
</compile_context>

<pallas_src>
import functools

import jax
import jax.numpy as jnp
from jax.experimental import pallas as pl
from jax.experimental.pallas import tpu as pltpu


# ---------------------------------------------------------------------------
# Kernel
# ---------------------------------------------------------------------------
def _rmsnorm_kernel(x_ref, w_ref, o_ref, *, eps, inv_dim, chunk_rows):
    """One (tile_rows, dim_p) block.  Compute runs in fixed row chunks so the
    f32 upcast temporaries stay small regardless of the DMA tile size."""
    tile_rows = x_ref.shape[0]
    n_chunks = tile_rows // chunk_rows       # static; tile_rows % chunk_rows == 0
    w = w_ref[...]                           # (1, dim_p), already out dtype

    for c in range(n_chunks):                # statically unrolled chunk loop
        sl = pl.ds(c * chunk_rows, chunk_rows)
        x = x_ref[sl, :]
        xf = x.astype(jnp.float32)                               # x.float()
        # sum * (1/true_dim): correct mean even when dim was lane-padded.
        ms = jnp.sum(xf * xf, axis=-1, keepdims=True) * inv_dim
        inv = jax.lax.rsqrt(ms + eps)                            # rsqrt(. + eps)
        normed = (xf * inv).astype(x.dtype)                      # .type_as(x)
        o_ref[sl, :] = normed.astype(o_ref.dtype) * w            # * weight


# ---------------------------------------------------------------------------
# Sizing helpers
# ---------------------------------------------------------------------------
def _sublane_pack(dtype):
    # minimum sublane granularity: 8 for 4-byte, 16 for 2-byte, 32 for 1-byte
    return max(8, 32 // jnp.dtype(dtype).itemsize)


def _round_up(x, m):
    return ((x + m - 1) // m) * m


def _round_down(x, m):
    return (x // m) * m


def _vmem_capacity_bytes():
    """Physical VMEM per TensorCore (v5e/v6e: 128 MiB, v7x: 64 MiB)."""
    try:
        return int(pltpu.get_tpu_info().vmem_capacity_bytes)
    except Exception:
        try:
            kind = jax.devices()[0].device_kind.lower()
        except Exception:
            kind = ""
        return (64 if "v7" in kind else 128) * 1024 * 1024


def _pick_chunk_rows(dim_p, pack):
    """Compute sub-chunk: ~1 MiB of f32 working set, capped at 256 rows."""
    target = (1 << 20) // max(dim_p * 4, 1)
    return max(pack, min(256, _round_down(target, pack)))


def _pick_tile_rows(rows, dim_p, x_dtype, out_dtype, pack, chunk_rows, vmem_cap):
    x_b = jnp.dtype(x_dtype).itemsize
    o_b = jnp.dtype(out_dtype).itemsize

    # f32 intermediates are bounded by the compute chunk, not the DMA tile:
    # upcast x + squared/product + normed  ~= 3 f32 copies of one chunk.
    compute_scratch = 3 * chunk_rows * dim_p * 4

    # Double-buffered input + output blocks must fit in what is left of VMEM.
    avail = int(0.70 * vmem_cap) - compute_scratch - (2 << 20)
    per_row_pipeline = 2 * dim_p * (x_b + o_b)
    tile_vmem = max(pack, avail // max(per_row_pipeline, 1))

    # Byte target per *input* block (multi-MiB blocks amortize the ~0.35us
    # per-step cost and reach ~85%+ of the HBM roofline).  A byte target,
    # not a row cap, so small dims still get big blocks.
    tile_target = max(pack, (8 << 20) // max(dim_p * x_b, 1))

    tile = max(pack, _round_down(min(tile_vmem, tile_target), pack))
    tile = min(tile, _round_up(rows, pack))
    if rows < pack:
        tile = rows                      # full-extent block is always legal
    return tile


# ---------------------------------------------------------------------------
# Public wrapper
# ---------------------------------------------------------------------------
def rmsnorm(x, weight, eps=1e-6, *, tile_rows=None):
    """RMSNorm over the last axis of x with per-feature weight."""
    orig_shape = x.shape
    dim = orig_shape[-1]
    rows = 1
    for s in orig_shape[:-1]:
        rows *= s

    # Output dtype mirrors PyTorch promotion of (x-dtype result) * weight.
    out_dtype = jnp.promote_types(x.dtype, weight.dtype)

    x2d = x.reshape(rows, dim)
    w1d = weight.astype(out_dtype)       # pre-cast once; stays resident in VMEM

    # Lane-dense last dim: pad to a multiple of 128 if needed (demo-sized dims;
    # typical model dims are already lane multiples and skip this copy).
    dim_p = _round_up(dim, 128)
    if dim_p != dim:
        x2d = jnp.pad(x2d, ((0, 0), (0, dim_p - dim)))
        w1d = jnp.pad(w1d, ((0, dim_p - dim),))
    w2d = w1d.reshape(1, dim_p)

    pack = max(_sublane_pack(x.dtype), _sublane_pack(out_dtype))
    vmem_cap = _vmem_capacity_bytes()
    chunk_rows = _pick_chunk_rows(dim_p, pack)

    if tile_rows is None:
        tile_rows = _pick_tile_rows(rows, dim_p, x.dtype, out_dtype,
                                    pack, chunk_rows, vmem_cap)
        # Guarantee >=2 grid blocks so ("parallel",) can shard across the two
        # v7x TensorCores (near-free on single-TC v5e/v6e).
        if pl.cdiv(rows, tile_rows) < 2 and tile_rows > pack:
            tile_rows = max(pack, _round_up(pl.cdiv(rows, 2), pack))
    else:
        # Validate a user-supplied tile: sublane-pack multiple or full extent.
        tile_rows = int(tile_rows)
        tile_rows = max(pack, _round_down(tile_rows, pack))
        tile_rows = min(tile_rows, _round_up(rows, pack))
        if rows < pack:
            tile_rows = rows

    # Make the DMA tile a whole number of compute chunks.
    chunk_rows = min(chunk_rows, tile_rows)
    tile_rows = max(chunk_rows, _round_down(tile_rows, chunk_rows))

    grid = (pl.cdiv(rows, tile_rows),)

    # Explicit scoped-VMEM limit: double-buffered in/out blocks + resident
    # weight + f32 chunk scratch, clamped below physical capacity.
    x_b = jnp.dtype(x.dtype).itemsize
    o_b = jnp.dtype(out_dtype).itemsize
    vmem_need = (2 * tile_rows * dim_p * x_b      # double-buffered input blocks
                 + 2 * tile_rows * dim_p * o_b    # double-buffered output blocks
                 + 2 * dim_p * o_b                # resident weight
                 + 3 * chunk_rows * dim_p * 4)    # f32 compute intermediates
    vmem_limit = int(max(1 << 20, min(vmem_need + (4 << 20),
                                      vmem_cap - (2 << 20))))

    out = pl.pallas_call(
        functools.partial(_rmsnorm_kernel, eps=float(eps),
                          inv_dim=1.0 / float(dim), chunk_rows=chunk_rows),
        out_shape=jax.ShapeDtypeStruct((rows, dim_p), out_dtype),
        grid_spec=pltpu.PrefetchScalarGridSpec(
            num_scalar_prefetch=0,
            grid=grid,
            in_specs=[
                pl.BlockSpec((tile_rows, dim_p), lambda i: (i, 0)),
                pl.BlockSpec((1, dim_p), lambda i: (0, 0)),   # resident weight
            ],
            out_specs=pl.BlockSpec((tile_rows, dim_p), lambda i: (i, 0)),
        ),
        compiler_params=pltpu.CompilerParams(
            dimension_semantics=("parallel",),   # row tiles shard across TCs (v7x)
            vmem_limit_bytes=vmem_limit,
        ),
    )(x2d, w2d)

    if dim_p != dim:
        out = out[:, :dim]
    return out.reshape(orig_shape)


# ---------------------------------------------------------------------------
# Reference + demo
# ---------------------------------------------------------------------------
def _ref_rmsnorm(x, weight, eps):
    xf = x.astype(jnp.float32)
    normed = (xf * jax.lax.rsqrt(jnp.mean(xf * xf, axis=-1, keepdims=True) + eps)
              ).astype(x.dtype)
    return normed * weight


if __name__ == "__main__":
    key = jax.random.PRNGKey(0)
    eps = 1e-6

    # Small shape consistent with the module: (batch=2, seq=8, dim=32), f32.
    # dim=32 also exercises the lane-padding path.
    batch, seq, dim = 2, 8, 32
    x = jax.random.normal(key, (batch, seq, dim), dtype=jnp.float32)
    weight = jnp.ones((dim,), dtype=jnp.float32)   # nn.Parameter(torch.ones(dim))

    y = rmsnorm(x, weight, eps=eps)
    y = jax.block_until_ready(y)
    ref = _ref_rmsnorm(x, weight, eps)
    assert y.shape == ref.shape
    assert y.dtype == ref.dtype
    assert jnp.allclose(y, ref, atol=1e-5, rtol=1e-5)

    # Secondary check: bf16 input, lane-multiple dim (no padding path),
    # exercises the 16-row sublane packing and the >=2-block split.
    kb = jax.random.PRNGKey(1)
    xb = jax.random.normal(kb, (2, 16, 256), dtype=jnp.bfloat16)
    wb = jnp.ones((256,), dtype=jnp.bfloat16)
    yb = jax.block_until_ready(rmsnorm(xb, wb, eps=eps))
    refb = _ref_rmsnorm(xb, wb, eps)
    assert yb.shape == refb.shape
    assert yb.dtype == refb.dtype
    assert jnp.allclose(yb.astype(jnp.float32), refb.astype(jnp.float32),
                        atol=1e-2, rtol=1e-2)

    print("KERNEL_OK")
</pallas_src>

<mosaic_0001>
module attributes {stable_mosaic.version = 11 : i64} {
  func.func @_rmsnorm_kernel(%arg0: i32, %arg1: memref<8x128xf32, #tpu.memory_space<vmem>>, %arg2: memref<1x128xf32, #tpu.memory_space<vmem>>, %arg3: memref<8x128xf32, #tpu.memory_space<vmem>>) attributes {dimension_semantics = [#tpu.dimension_semantics<parallel>], iteration_bounds = array<i64: 2>, scalar_prefetch = 0 : i64, scratch_operands = 0 : i64, tpu.core_type = #tpu.core_type<tc>, window_params = [{transform_indices = @transform_0, window_bounds = array<i64: 8, 128>}, {pipeline_mode = #tpu.pipeline_mode<synchronous>, transform_indices = @transform_1, window_bounds = array<i64: 1, 128>}, {transform_indices = @transform_2, window_bounds = array<i64: 8, 128>}]} {
    %c0 = arith.constant 0 : index
    %c0_0 = arith.constant 0 : index
    %0 = vector.load %arg2[%c0, %c0_0] : memref<1x128xf32, #tpu.memory_space<vmem>>, vector<1x128xf32>
    %c0_1 = arith.constant 0 : index
    %c0_2 = arith.constant 0 : index
    %1 = vector.load %arg1[%c0_1, %c0_2] : memref<8x128xf32, #tpu.memory_space<vmem>>, vector<8x128xf32>
    %2 = arith.mulf %1, %1 : vector<8x128xf32>
    %cst = arith.constant dense<0.000000e+00> : vector<8xf32>
    %3 = vector.multi_reduction <add>, %2, %cst [1] : vector<8x128xf32> to vector<8xf32>
    %4 = vector.shape_cast %3 : vector<8xf32> to vector<8x1xf32>
    %cst_3 = arith.constant 3.125000e-02 : f32
    %5 = vector.broadcast %cst_3 : f32 to vector<8x1xf32>
    %6 = arith.mulf %4, %5 : vector<8x1xf32>
    %cst_4 = arith.constant 9.99999997E-7 : f32
    %7 = vector.broadcast %cst_4 : f32 to vector<8x1xf32>
    %8 = arith.addf %6, %7 : vector<8x1xf32>
    %9 = math.rsqrt %8 : vector<8x1xf32>
    %10 = vector.broadcast %9 : vector<8x1xf32> to vector<8x128xf32>
    %11 = arith.mulf %1, %10 : vector<8x128xf32>
    %12 = vector.broadcast %0 : vector<1x128xf32> to vector<8x128xf32>
    %13 = arith.mulf %11, %12 : vector<8x128xf32>
    %c0_5 = arith.constant 0 : index
    %c0_6 = arith.constant 0 : index
    %14 = vector.load %arg3[%c0_5, %c0_6] : memref<8x128xf32, #tpu.memory_space<vmem>>, vector<8x128xf32>
    tpu.vector_store %arg3[%c0_5, %c0_6], %13 {strides = array<i32>} : memref<8x128xf32, #tpu.memory_space<vmem>>, vector<8x128xf32>,
    return
  }
  func.func @transform_0(%arg0: i32) -> (i32, i32) {
    %c0_i32 = arith.constant 0 : i32
    %c0_i32_0 = arith.constant 0 : i32
    return %arg0, %c0_i32 : i32, i32
  }
  func.func @transform_1(%arg0: i32) -> (i32, i32) {
    %c0_i32 = arith.constant 0 : i32
    %c0_i32_0 = arith.constant 0 : i32
    %c0_i32_1 = arith.constant 0 : i32
    return %c0_i32, %c0_i32_0 : i32, i32
  }
  func.func @transform_2(%arg0: i32) -> (i32, i32) {
    %c0_i32 = arith.constant 0 : i32
    %c0_i32_0 = arith.constant 0 : i32
    return %arg0, %c0_i32 : i32, i32
  }
}

</mosaic_0001>

<llo_original>
// kernel: tpu_custom_call.1
$region0: #{tpu_custom_call.1}
  #allocation0 [shape = 'u32[]', space=smem, size = 0x4, offset = 0x4, fixed_abs, tag = 'smem constant byte address 0x4 - core index']
  #allocation1 [shape = 'u32[72,128]{1,0:T(1,128)}', space=vmem, size = 0x9000, scoped, tag = 'internal scratch']
  %s0 = inlined_call_operand.hbm [shape: f32[16,128], index: 0, kind: input, shape index: {}]
  %s1 = inlined_call_operand.hbm [shape: f32[1,128], index: 1, kind: input, shape index: {}]
  %s2 = inlined_call_operand.hbm [shape: f32[16,128], index: 2, kind: output, shape index: {}]
  %s3 = sld [smem:[#allocation0]]
  $region49: #{tpu_custom_call.1} parent=0
    _
  %s5 = ssub.s32 1, %s3
  %s6 = scalar_select 0, %s5, %s3
  $region1: #{tpu_custom_call.1} parent=0
    #allocation2 [shape = 'u8[8192]{0}', space=vmem, size = 0x2000, scoped, tag = 'input window, operand 0']
    #allocation3 [shape = 's32[2]{0}', space=sflag, size = 0x8, scoped, tag = 'scoped memory for tpu_custom_call.1']
    #allocation4 [shape = 's32[2]{0}', space=sflag, size = 0x8, scoped, tag = 'scoped memory for tpu_custom_call.1']
    #allocation5 [shape = 'u8[512]{0}', space=vmem, size = 0x400, scoped, tag = 'input window, operand 1, single buffered']
    #allocation6 [shape = 's32[1]{0}', space=sflag, size = 0x4, scoped, tag = 'scoped memory for tpu_custom_call.1']
    #allocation7 [shape = 'u8[8192]{0}', space=vmem, size = 0x2000, scoped, tag = 'output window, operand 0']
    %7 = vsyncpa [#allocation3], 0
    %s8 = scalar_lea.sflag [#allocation3], 1
    %9 = vsyncpa %s8, 0
    %10 = vsyncpa [#allocation6], 0
    %11 = vsyncpa [#allocation4], 0
    %s12 = scalar_lea.sflag [#allocation4], 1
    %13 = vsyncpa %s12, 0
    loop: start=0, step=1, limit=4
    $region2: #{tpu_custom_call.1} parent=1 // loop_pre_header
      _
    $region3: #{tpu_custom_call.1} parent=1 // loop_header
      %s15 = sphi 0, %s19
      %p16 = scmp.ge.s32.totalorder %s15, 4
      %s25 = sphi 0, %s27
      %s28 = sphi 0, %s25
      %s29 = sphi 0, %s28
      %s45 = sphi 0, %s29
      %s49 = sphi 0, %s49
      %s51 = sphi 0, %s49
      %s52 = sphi 0, %s51
      %s66 = sphi 0, %s52
      %s72 = sphi 0, %s74
      %s75 = sphi 0, %s72
      %s76 = sphi 0, %s75
      %s92 = sphi 0, %s76
    $region4: #{tpu_custom_call.1} parent=1 // loop_header_branch
      %18 = sbr.rel (%p16) target = $region8
    $region5: #{tpu_custom_call.1} parent=1 // loop_body
      %s20 = ssub.s32 %s15, 1
      %s21 = ssub.s32 %s15, 2
      %s22 = sadd.s32 %s15, 1
      %s23 = ssub.s32 %s15, %s22
      %p24 = scmp.eq.s32.totalorder %s23, 0
      %s26 = sadd.s32 %s25, 1
      %s27 = scalar_select %p24, %s25, %s26
      %p30 = pneg %p24
      %p31 = scmp.eq.s32.totalorder %s15, 1
      %p32 = por %p30, %p31
      %p33 = scmp.ne.s32.totalorder %s25, %s28
      %p34 = scmp.eq.s32.totalorder %s15, 0
      %p35 = por %p33, %p34
      %p36 = scmp.ne.s32.totalorder %s25, %s28
      %p37 = scmp.eq.s32.totalorder %s20, 1
      %p38 = por %p36, %p37
      %p39 = scmp.ne.s32.totalorder %s28, %s29
      %p40 = scmp.eq.s32.totalorder %s20, 0
      %p41 = por %p39, %p40
      %p42 = scmp.ne.s32.totalorder %s28, %s29
      %p43 = scmp.eq.s32.totalorder %s21, 1
      %p44 = por %p42, %p43
      %p46 = scmp.ne.s32.totalorder %s29, %s45
      %p47 = scmp.eq.s32.totalorder %s21, 0
      %p48 = por %p46, %p47
      %s50 = sadd.s32 %s49, 1
      %p53 = scmp.eq.s32.totalorder %s15, 1
      %p54 = scmp.ne.s32.totalorder %s49, %s51
      %p55 = scmp.eq.s32.totalorder %s15, 0
      %p56 = por %p54, %p55
      %p57 = scmp.ne.s32.totalorder %s49, %s51
      %p58 = scmp.eq.s32.totalorder %s20, 1
      %p59 = por %p57, %p58
      %p60 = scmp.ne.s32.totalorder %s51, %s52
      %p61 = scmp.eq.s32.totalorder %s20, 0
      %p62 = por %p60, %p61
      %p63 = scmp.ne.s32.totalorder %s51, %s52
      %p64 = scmp.eq.s32.totalorder %s21, 1
      %p65 = por %p63, %p64
      %p67 = scmp.ne.s32.totalorder %s52, %s66
      %p68 = scmp.eq.s32.totalorder %s21, 0
      %p69 = por %p67, %p68
      %s70 = ssub.s32 %s15, %s22
      %p71 = scmp.eq.s32.totalorder %s70, 0
      %s73 = sadd.s32 %s72, 1
      %s74 = scalar_select %p71, %s72, %s73
      %p77 = pneg %p71
      %p78 = scmp.eq.s32.totalorder %s15, 1
      %p79 = por %p77, %p78
      %p80 = scmp.ne.s32.totalorder %s72, %s75
      %p81 = scmp.eq.s32.totalorder %s15, 0
      %p82 = por %p80, %p81
      %p83 = scmp.ne.s32.totalorder %s72, %s75
      %p84 = scmp.eq.s32.totalorder %s20, 1
      %p85 = por %p83, %p84
      %p86 = scmp.ne.s32.totalorder %s75, %s76
      %p87 = scmp.eq.s32.totalorder %s20, 0
      %p88 = por %p86, %p87
      %p89 = scmp.ne.s32.totalorder %s75, %s76
      %p90 = scmp.eq.s32.totalorder %s21, 1
      %p91 = por %p89, %p90
      %p93 = scmp.ne.s32.totalorder %s76, %s92
      %p94 = scmp.eq.s32.totalorder %s21, 0
      %p95 = por %p93, %p94
      %p96 = scmp.le.s32.totalorder 1, %s15
      %p97 = scmp.lt.s32.totalorder %s15, 3
      %p98 = pnand %p96, %p97
      %p99 = pneg %p98
      // Predicated region
      $region9: #{tpu_custom_call.1} parent=5 // pred_check
        _
      $region10: #{tpu_custom_call.1} parent=5 // pred_check_branch
        %101 = sbr.rel (%p98) target = $region12
      $region11: #{tpu_custom_call.1} parent=5 // pred_region
        %s102 = ssub.s32 %s15, 1
        // Predicated region
        $region13: #{tpu_custom_call.1} parent=11 // pred_check
          %p103 = pneg %p62
        $region14: #{tpu_custom_call.1} parent=11 // pred_check_branch
          %105 = sbr.rel (%p103) target = $region16
        $region15: #{tpu_custom_call.1} parent=11 // pred_region
          %107 = vsyncadd [#allocation6], 0
          %s109 = sshll.u32 %s1, 4
          %s110 = int_to_ptr.hbm [resolvable:$true] %s109
          %s111 = sshll.u32 [#allocation5], 4
          %s112 = int_to_ptr.vmem [resolvable:$true] %s111
          %114 = dma.hbm_to_vmem [thread:$0]  %s110, 16, %s112, [#allocation6]
        $region16: #{tpu_custom_call.1} parent=11 // pred_fallthru
          _
      $region12: #{tpu_custom_call.1} parent=5 // pred_fallthru
        _
      %p115 = scmp.lt.s32.totalorder %s15, 2
      // Predicated region
      $region17: #{tpu_custom_call.1} parent=5 // pred_check
        %p116 = pneg %p115
      $region18: #{tpu_custom_call.1} parent=5 // pred_check_branch
        %118 = sbr.rel (%p116) target = $region20
      $region19: #{tpu_custom_call.1} parent=5 // pred_region
        // Predicated region
        $region21: #{tpu_custom_call.1} parent=19 // pred_check
          %p119 = pneg %p35
        $region22: #{tpu_custom_call.1} parent=19 // pred_check_branch
          %121 = sbr.rel (%p119) target = $region24
        $region23: #{tpu_custom_call.1} parent=19 // pred_region
          %s122 = sand.u32 %s25, 1
          %s123 = scalar_lea.sflag [#allocation3], %s122
          %s124 = sand.u32 %s25, 1
          %s125 = smul.addr %s124, 8
          %s126 = scalar_lea.vmem [#allocation2], %s125
          %128 = vsyncadd %s123, 0
          %s129 = smul.addr %s15, 8
          %s130 = scalar_lea.hbm %s0, %s129
          %s132 = sshll.u32 %s130, 4
          %s133 = int_to_ptr.hbm [resolvable:$true] %s132
          %s134 = sshll.u32 %s126, 4
          %s135 = int_to_ptr.vmem [resolvable:$true] %s134
          %137 = dma.hbm_to_vmem [thread:$0]  %s133, 128, %s135, %s123
        $region24: #{tpu_custom_call.1} parent=19 // pred_fallthru
          _
      $region20: #{tpu_custom_call.1} parent=5 // pred_fallthru
        _
      %p138 = scmp.le.s32.totalorder 1, %s15
      %p139 = scmp.lt.s32.totalorder %s15, 3
      %p140 = pnand %p138, %p139
      %p141 = pneg %p140
      // Predicated region
      $region25: #{tpu_custom_call.1} parent=5 // pred_check
        _
      $region26: #{tpu_custom_call.1} parent=5 // pred_check_branch
        %143 = sbr.rel (%p140) target = $region28
      $region27: #{tpu_custom_call.1} parent=5 // pred_region
        %s144 = ssub.s32 %s15, 1
        %s145 = sand.u32 %s28, 1
        %s146 = scalar_lea.sflag [#allocation3], %s145
        %s147 = sand.u32 %s28, 1
        %s148 = smul.addr %s147, 8
        %s149 = scalar_lea.vmem [#allocation2], %s148
        // Predicated region
        $region29: #{tpu_custom_call.1} parent=27 // pred_check
          %p150 = pneg %p41
        $region30: #{tpu_custom_call.1} parent=27 // pred_check_branch
          %152 = sbr.rel (%p150) target = $region32
        $region31: #{tpu_custom_call.1} parent=27 // pred_region
          %154 = dma.done %s146, 128
        $region32: #{tpu_custom_call.1} parent=27 // pred_fallthru
          _
        // Predicated region
        $region33: #{tpu_custom_call.1} parent=27 // pred_check
          %p155 = pneg %p62
        $region34: #{tpu_custom_call.1} parent=27 // pred_check_branch
          %157 = sbr.rel (%p155) target = $region36
        $region35: #{tpu_custom_call.1} parent=27 // pred_region
          %159 = dma.done [#allocation6], 16
        $region36: #{tpu_custom_call.1} parent=27 // pred_fallthru
          _
        %s160 = sand.u32 %s28, 1
        %s161 = scalar_lea.sflag [#allocation3], %s160
        %s162 = sand.u32 %s28, 1
        %s163 = smul.addr %s162, 8
        %s164 = scalar_lea.vmem [#allocation2], %s163
        %p165 = pneg %p41
        %p166 = pneg %p38
        %p167 = pneg %p62
        %p168 = pneg %p59
        %p169 = pneg %p88
        %p170 = pneg %p85
        %s171 = sand.u32 %s75, 1
        %s172 = scalar_lea.sflag [#allocation4], %s171
        %s173 = sand.u32 %s75, 1
        %s174 = smul.addr %s173, 8
        %s175 = scalar_lea.vmem [#allocation7], %s174
        %v176 = vld [vmem:[#allocation5] sm:$0x1]
        %v177 = vld [vmem:[%s149] sm:$0xff]
        %v178 = vmul.f32 %v177, %v177
        %179 = vadd.xlane.f32.xlu0 %v178
        %v180 = vpop.xlane.xlu0 %179
        %v181 = vmul.f32 %v180, 0.03125
        %v182 = vadd.f32 %v181, 1e-06
        %v183 = vrsqrt.pop %v182
        %v184 = vmul.f32 %v183, %v182
        %v185 = vmul.f32 %v184, %v183
        %v186 = vmul.f32 0.5, %v185
        %v187 = vsub.f32 1.5, %v186
        %v188 = vmul.f32 %v183, %v187
        %vm189 = vweird.f32 %v182
        %vm190 = vweird.f32 %v183
        %vm191 = vmor %vm189, %vm190
        %v192 = vsel %vm191, %v183, %v188
        %v193 = vmul.f32 %v177, %v192
        %v195 = vperm.slane %v176, 0
        %v197 = vmul.f32 %v193, %v195
        %198 = vst [vmem:[%s175] sm:$0xff] %v197
        %s199 = sand.u32 %s75, 1
        %s200 = scalar_lea.sflag [#allocation4], %s199
        %s201 = sand.u32 %s75, 1
        %s202 = smul.addr %s201, 8
        %s203 = scalar_lea.vmem [#allocation7], %s202
        // Predicated region
        $region37: #{tpu_custom_call.1} parent=27 // pred_check
          %p204 = pneg %p85
        $region38: #{tpu_custom_call.1} parent=27 // pred_check_branch
          %206 = sbr.rel (%p204) target = $region40
        $region39: #{tpu_custom_call.1} parent=27 // pred_region
          %208 = vsyncadd %s200, 0
          %s209 = smul.addr %s20, 8
          %s210 = scalar_lea.hbm %s2, %s209
          %s212 = sshll.u32 %s203, 4
          %s213 = int_to_ptr.vmem [resolvable:$true] %s212
          %s214 = sshll.u32 %s210, 4
          %s215 = int_to_ptr.hbm [resolvable:$true] %s214
          %217 = dma.vmem_to_hbm [thread:$0]  %s213, 128, %s215, %s200
        $region40: #{tpu_custom_call.1} parent=27 // pred_fallthru
          _
      $region28: #{tpu_custom_call.1} parent=5 // pred_fallthru
        _
      %p218 = scmp.le.s32.totalorder 2, %s15
      // Predicated region
      $region41: #{tpu_custom_call.1} parent=5 // pred_check
        %p219 = pneg %p218
      $region42: #{tpu_custom_call.1} parent=5 // pred_check_branch
        %221 = sbr.rel (%p219) target = $region44
      $region43: #{tpu_custom_call.1} parent=5 // pred_region
        %s222 = ssub.s32 %s15, 2
        // Predicated region
        $region45: #{tpu_custom_call.1} parent=43 // pred_check
          %p223 = pneg %p91
        $region46: #{tpu_custom_call.1} parent=43 // pred_check_branch
          %225 = sbr.rel (%p223) target = $region48
        $region47: #{tpu_custom_call.1} parent=43 // pred_region
          %s226 = sand.u32 %s76, 1
          %s227 = scalar_lea.sflag [#allocation4], %s226
          %s228 = sand.u32 %s76, 1
          %s229 = smul.addr %s228, 8
          %s230 = scalar_lea.vmem [#allocation7], %s229
          %232 = dma.done %s227, 128
        $region48: #{tpu_custom_call.1} parent=43 // pred_fallthru
          _
      $region44: #{tpu_custom_call.1} parent=5 // pred_fallthru
        _
    $region6: #{tpu_custom_call.1} parent=1 // loop_footer
      %s19 = sadd.s32 1, %s15
    $region7: #{tpu_custom_call.1} parent=1 // loop_footer_branch
      %14 = sbr.rel target = $region3
    $region8: #{tpu_custom_call.1} parent=1 // loop_exit
      _
    %233 = vsyncpa [#allocation3], 1
    %s234 = scalar_lea.sflag [#allocation3], 1
    %235 = vsyncpa %s234, 1
    %236 = vsyncpa [#allocation6], 1
    %237 = vsyncpa [#allocation4], 1
    %s238 = scalar_lea.sflag [#allocation4], 1
    %239 = vsyncpa %s238, 1

</llo_original>
